<compile_context>
chip_gen: v5e
topology: v5e:2x2
jax: 0.10.0
libtpu: 0.0.40
codegen_flags: <defaults>
</compile_context>

<pallas_src>
import functools

import jax
import jax.numpy as jnp
from jax.experimental import pallas as pl
from jax.experimental.pallas import tpu as pltpu


def _bias_fill_kernel(b_ref, o_ref):
    # b_ref: (TM, 1)  per-row bias column, already in the output dtype
    # o_ref: (TM, TL) output tile; TM % 8 == 0, TL % 128 == 0 -> dense unmasked stores
    o_ref[...] = jnp.broadcast_to(b_ref[...], o_ref.shape)


def _round_up(x, m):
    return (x + m - 1) // m * m


def _pick_tiles(r_pad, l_pad, dtype_bytes, budget_bytes=4 << 20):
    """Pick (TM, TL) with TM a multiple of 8 dividing r_pad and TL a multiple of 128
    dividing l_pad, keeping TM*TL*dtype_bytes <= budget (double-buffered tile stays
    well inside the 16 MiB v5e scoped-VMEM default).  Also tries to produce >= 2 grid
    blocks so both v7x TensorCores get work under "parallel" semantics."""
    # Sublane tile: 8 already gives dense vst; grow modestly to amortize step overhead.
    tm = 8
    while tm * 2 <= min(r_pad, 64) and r_pad % (tm * 2) == 0:
        tm *= 2
    # Lane tile: largest multiple of 128 dividing l_pad that fits the VMEM budget.
    max_tl = max((budget_bytes // (tm * dtype_bytes)) // 128 * 128, 128)
    tl = min(l_pad, max_tl)
    while l_pad % tl != 0:          # terminates at 128: l_pad is a multiple of 128
        tl -= 128
    # Megacore: if everything landed in a single block, split lanes into two blocks.
    if (r_pad // tm) * (l_pad // tl) < 2 and l_pad >= 256:
        tl2 = (l_pad // 2) // 128 * 128
        while tl2 >= 128 and l_pad % tl2 != 0:
            tl2 -= 128
        if tl2 >= 128:
            tl = tl2
    return tm, tl


def head_bias_broadcast(conv_bias, n, c_out, h, w, out_dtype, *, force_pallas=False):
    """conv1x1(zeros) == bias broadcast, returned in NCHW layout."""
    hw = h * w
    dtype_bytes = jnp.dtype(out_dtype).itemsize
    total_bytes = n * c_out * hw * dtype_bytes

    # Tiny outputs: a pallas_call launch costs more than the fill itself.
    if not force_pallas and total_bytes < (1 << 20):
        return jnp.broadcast_to(
            conv_bias.astype(out_dtype)[None, :, None, None], (n, c_out, h, w))

    r = n * c_out
    r_pad = _round_up(r, 8)        # sublane-dense rows
    l_pad = _round_up(hw, 128)     # lane-dense columns
    tm, tl = _pick_tiles(r_pad, l_pad, dtype_bytes)
    grid = (r_pad // tm, l_pad // tl)

    # Per-row bias column: row index = n_idx*c_out + c_idx  ->  bias[c_idx].
    # Pre-cast to out_dtype in the wrapper (no per-tile astype in the kernel).
    bias_rows = jnp.tile(conv_bias.astype(out_dtype), n)                # (N*C_out,)
    bias_rows = jnp.pad(bias_rows, (0, r_pad - r)).reshape(r_pad, 1)    # (R_pad, 1)

    out = pl.pallas_call(
        _bias_fill_kernel,
        out_shape=jax.ShapeDtypeStruct((r_pad, l_pad), out_dtype),
        grid=grid,
        in_specs=[pl.BlockSpec((tm, 1), lambda i, j: (i, 0))],   # bias column per row-block
        out_specs=pl.BlockSpec((tm, tl), lambda i, j: (i, j)),
        compiler_params=pltpu.CompilerParams(
            dimension_semantics=("parallel", "parallel"),
        ),
        cost_estimate=pl.CostEstimate(
            flops=0,
            transcendentals=0,
            bytes_accessed=r_pad * l_pad * dtype_bytes + r_pad * dtype_bytes,
        ),
    )(bias_rows)

    # Drop padding (no-op when already aligned); (N*C_out, H*W) -> NCHW is a
    # contiguous reshape, no relayout / transpose.
    out = out[:r, :hw]
    return out.reshape(n, c_out, h, w)


def head_forward(ys, conv_weight, conv_bias, unet_weights, *, force_pallas=False):
    """JAX/Pallas equivalent of Head.forward.

    ys:           list of (N, C_in, H, W) arrays (NCHW, like PyTorch)
    conv_weight:  (C_out, C_in, 1, 1) -- multiplied by a zero input, does not affect output
    conv_bias:    (C_out,)
    unet_weights: (n_unet,) -- only used in the reference's `y += x*w` with x == 0
                  (a value-level no-op; JAX arrays are immutable so the in-place
                  mutation of the caller's ys is not replicated).
    """
    del unet_weights  # no effect on the returned value (x == 0)
    n, _, h, w = ys[0].shape
    c_out = conv_weight.shape[0]
    return head_bias_broadcast(conv_bias, n, c_out, h, w, ys[0].dtype,
                               force_pallas=force_pallas)


if __name__ == "__main__":
    key = jax.random.PRNGKey(0)
    k_w, k_b, k_uw, k_y0, k_y1 = jax.random.split(key, 5)

    # Module config: n_channels=4, n_classes=3, n_unet=2
    N, C_in, H, W = 2, 4, 16, 16
    C_out = 3
    n_unet = 2

    conv_weight = jax.random.normal(k_w, (C_out, C_in, 1, 1), dtype=jnp.float32)
    conv_bias = jax.random.normal(k_b, (C_out,), dtype=jnp.float32)
    unet_weights = jax.random.normal(k_uw, (n_unet,), dtype=jnp.float32)

    ys = [
        jax.random.normal(k_y0, (N, C_in, H, W), dtype=jnp.float32),
        jax.random.normal(k_y1, (N, C_in, H, W), dtype=jnp.float32),
    ]

    # force_pallas=True so the demo actually exercises the Pallas kernel
    # (the tiny-output fast path would otherwise take over at this size).
    fwd = functools.partial(head_forward, force_pallas=True)
    out = fwd(ys, conv_weight, conv_bias, unet_weights)
    out = jax.block_until_ready(out)

    # Reference: conv applied to zeros => bias broadcast over (N, H, W), NCHW.
    ref = jnp.broadcast_to(conv_bias.reshape(1, C_out, 1, 1), (N, C_out, H, W))
    assert out.shape == (N, C_out, H, W), out.shape
    assert out.dtype == ys[0].dtype, out.dtype
    assert jnp.allclose(out, ref, atol=1e-6), "mismatch vs reference semantics"

    # Also check the non-forced (XLA fast-path) wrapper agrees.
    out_fast = jax.block_until_ready(head_forward(ys, conv_weight, conv_bias, unet_weights))
    assert jnp.allclose(out_fast, ref, atol=1e-6)

    print("KERNEL_OK")
</pallas_src>

<mosaic_0001>
module attributes {stable_mosaic.version = 11 : i64} {
  func.func @_bias_fill_kernel(%arg0: i32, %arg1: i32, %arg2: memref<8x1xf32, #tpu.memory_space<vmem>>, %arg3: memref<8x128xf32, #tpu.memory_space<vmem>>) attributes {dimension_semantics = [#tpu.dimension_semantics<parallel>, #tpu.dimension_semantics<parallel>], iteration_bounds = array<i64: 1, 2>, scalar_prefetch = 0 : i64, scratch_operands = 0 : i64, tpu.core_type = #tpu.core_type<tc>, window_params = [{transform_indices = @transform_0, window_bounds = array<i64: 8, 1>}, {transform_indices = @transform_1, window_bounds = array<i64: 8, 128>}]} {
    %c0 = arith.constant 0 : index
    %c0_0 = arith.constant 0 : index
    %0 = vector.load %arg2[%c0, %c0_0] : memref<8x1xf32, #tpu.memory_space<vmem>>, vector<8x1xf32>
    %1 = vector.shape_cast %0 : vector<8x1xf32> to vector<8x1xf32>
    %2 = vector.broadcast %1 : vector<8x1xf32> to vector<8x128xf32>
    %c0_1 = arith.constant 0 : index
    %c0_2 = arith.constant 0 : index
    %3 = vector.load %arg3[%c0_1, %c0_2] : memref<8x128xf32, #tpu.memory_space<vmem>>, vector<8x128xf32>
    tpu.vector_store %arg3[%c0_1, %c0_2], %2 {strides = array<i32>} : memref<8x128xf32, #tpu.memory_space<vmem>>, vector<8x128xf32>,
    return
  }
  func.func @transform_0(%arg0: i32, %arg1: i32) -> (i32, i32) {
    %c0_i32 = arith.constant 0 : i32
    %c0_i32_0 = arith.constant 0 : i32
    return %arg0, %c0_i32 : i32, i32
  }
  func.func @transform_1(%arg0: i32, %arg1: i32) -> (i32, i32) {
    %c0_i32 = arith.constant 0 : i32
    return %arg0, %arg1 : i32, i32
  }
}

</mosaic_0001>

<llo_original>
// kernel: tpu_custom_call.1
$region0: #{tpu_custom_call.1}
  #allocation0 [shape = 'u32[]', space=smem, size = 0x4, offset = 0x4, fixed_abs, tag = 'smem constant byte address 0x4 - core index']
  #allocation1 [shape = 'u32[72,128]{1,0:T(1,128)}', space=vmem, size = 0x9000, scoped, tag = 'internal scratch']
  %s0 = inlined_call_operand.vmem [shape: f32[8,1], index: 0, kind: input, shape index: {}]
  %s1 = inlined_call_operand.hbm [shape: f32[8,256], index: 1, kind: output, shape index: {}]
  %s2 = sld [smem:[#allocation0]]
  $region37: #{tpu_custom_call.1} parent=0
    _
  %s4 = ssub.s32 1, %s2
  %s5 = scalar_select 0, %s4, %s2
  $region1: #{tpu_custom_call.1} parent=0
    #allocation2 [shape = 'u8[8192]{0}', space=vmem, size = 0x2000, scoped, tag = 'output window, operand 0']
    #allocation3 [shape = 's32[2]{0}', space=sflag, size = 0x8, scoped, tag = 'scoped memory for tpu_custom_call.1']
    %6 = vsyncpa [#allocation3], 0
    %s7 = scalar_lea.sflag [#allocation3], 1
    %8 = vsyncpa %s7, 0
    loop: start=0, step=1, limit=4
    $region2: #{tpu_custom_call.1} parent=1 // loop_pre_header
      _
    $region3: #{tpu_custom_call.1} parent=1 // loop_header
      %s10 = sphi 0, %s14
      %p11 = scmp.ge.s32.totalorder %s10, 4
      %s17 = sphi 0, %s29
      %s18 = sphi 0, %s25
      %s19 = sphi 0, %s17
      %s20 = sphi 0, %s18
      %s21 = sphi 0, %s19
      %s22 = sphi 0, %s20
      %s32 = sphi 0, %s34
      %s35 = sphi 0, %s32
      %s36 = sphi 0, %s35
      %s52 = sphi 0, %s36
      %s60 = sphi 0, %s62
      %s63 = sphi 0, %s60
      %s64 = sphi 0, %s63
      %s80 = sphi 0, %s64
    $region4: #{tpu_custom_call.1} parent=1 // loop_header_branch
      %13 = sbr.rel (%p11) target = $region8
    $region5: #{tpu_custom_call.1} parent=1 // loop_body
      %s15 = ssub.s32 %s10, 1
      %s16 = ssub.s32 %s10, 2
      %s23 = sadd.s32 1, %s18
      %p24 = scmp.ge.s32.totalorder %s23, 2
      %s25 = scalar_select %p24, 0, %s23
      %s26 = sadd.s32 1, %s17
      %s27 = scalar_select %p24, %s26, %s17
      %p28 = scmp.ge.s32.totalorder %s27, 1
      %s29 = scalar_select %p28, 0, %s27
      %s30 = ssub.s32 %s17, %s29
      %p31 = scmp.eq.s32.totalorder %s30, 0
      %s33 = sadd.s32 %s32, 1
      %s34 = scalar_select %p31, %s32, %s33
      %p37 = pneg %p31
      %p38 = scmp.eq.s32.totalorder %s10, 1
      %p39 = por %p37, %p38
      %p40 = scmp.ne.s32.totalorder %s32, %s35
      %p41 = scmp.eq.s32.totalorder %s10, 0
      %p42 = por %p40, %p41
      %p43 = scmp.ne.s32.totalorder %s32, %s35
      %p44 = scmp.eq.s32.totalorder %s15, 1
      %p45 = por %p43, %p44
      %p46 = scmp.ne.s32.totalorder %s35, %s36
      %p47 = scmp.eq.s32.totalorder %s15, 0
      %p48 = por %p46, %p47
      %p49 = scmp.ne.s32.totalorder %s35, %s36
      %p50 = scmp.eq.s32.totalorder %s16, 1
      %p51 = por %p49, %p50
      %p53 = scmp.ne.s32.totalorder %s36, %s52
      %p54 = scmp.eq.s32.totalorder %s16, 0
      %p55 = por %p53, %p54
      %s56 = ssub.s32 %s17, %s29
      %s57 = ssub.s32 %s18, %s25
      %s58 = sor.u32 %s56, %s57
      %p59 = scmp.eq.s32.totalorder %s58, 0
      %s61 = sadd.s32 %s60, 1
      %s62 = scalar_select %p59, %s60, %s61
      %p65 = pneg %p59
      %p66 = scmp.eq.s32.totalorder %s10, 1
      %p67 = por %p65, %p66
      %p68 = scmp.ne.s32.totalorder %s60, %s63
      %p69 = scmp.eq.s32.totalorder %s10, 0
      %p70 = por %p68, %p69
      %p71 = scmp.ne.s32.totalorder %s60, %s63
      %p72 = scmp.eq.s32.totalorder %s15, 1
      %p73 = por %p71, %p72
      %p74 = scmp.ne.s32.totalorder %s63, %s64
      %p75 = scmp.eq.s32.totalorder %s15, 0
      %p76 = por %p74, %p75
      %p77 = scmp.ne.s32.totalorder %s63, %s64
      %p78 = scmp.eq.s32.totalorder %s16, 1
      %p79 = por %p77, %p78
      %p81 = scmp.ne.s32.totalorder %s64, %s80
      %p82 = scmp.eq.s32.totalorder %s16, 0
      %p83 = por %p81, %p82
      %p84 = scmp.le.s32.totalorder 1, %s10
      %p85 = scmp.lt.s32.totalorder %s10, 3
      %p86 = pnand %p84, %p85
      %p87 = pneg %p86
      // Predicated region
      $region9: #{tpu_custom_call.1} parent=5 // pred_check
        _
      $region10: #{tpu_custom_call.1} parent=5 // pred_check_branch
        %89 = sbr.rel (%p86) target = $region12
      $region11: #{tpu_custom_call.1} parent=5 // pred_region
        %s90 = ssub.s32 %s10, 1
        // Predicated region
        $region13: #{tpu_custom_call.1} parent=11 // pred_check
          %p91 = pneg %p48
        $region14: #{tpu_custom_call.1} parent=11 // pred_check_branch
          %93 = sbr.rel (%p91) target = $region16
        $region15: #{tpu_custom_call.1} parent=11 // pred_region
          %p94 = scmp.lt.s32.totalorder %s19, 0
          %s95 = scalar_select %p94, %s19, 0
          %s96 = smul.addr %s95, 8
          %s97 = scalar_lea.vmem %s0, %s96
        $region16: #{tpu_custom_call.1} parent=11 // pred_fallthru
          _
      $region12: #{tpu_custom_call.1} parent=5 // pred_fallthru
        _
      %p98 = scmp.lt.s32.totalorder %s10, 2
      // Predicated region
      $region17: #{tpu_custom_call.1} parent=5 // pred_check
        %p99 = pneg %p98
      $region18: #{tpu_custom_call.1} parent=5 // pred_check_branch
        %101 = sbr.rel (%p99) target = $region20
      $region19: #{tpu_custom_call.1} parent=5 // pred_region
        _
      $region20: #{tpu_custom_call.1} parent=5 // pred_fallthru
        _
      %p102 = scmp.le.s32.totalorder 1, %s10
      %p103 = scmp.lt.s32.totalorder %s10, 3
      %p104 = pnand %p102, %p103
      %p105 = pneg %p104
      // Predicated region
      $region21: #{tpu_custom_call.1} parent=5 // pred_check
        _
      $region22: #{tpu_custom_call.1} parent=5 // pred_check_branch
        %107 = sbr.rel (%p104) target = $region24
      $region23: #{tpu_custom_call.1} parent=5 // pred_region
        %s108 = ssub.s32 %s10, 1
        %p109 = scmp.lt.s32.totalorder %s19, 0
        %s110 = scalar_select %p109, %s19, 0
        %s111 = smul.addr %s110, 8
        %s112 = scalar_lea.vmem %s0, %s111
        %p113 = pneg %p48
        %p114 = pneg %p45
        %p115 = pneg %p76
        %p116 = pneg %p73
        %s117 = sand.u32 %s63, 1
        %s118 = scalar_lea.sflag [#allocation3], %s117
        %s119 = sand.u32 %s63, 1
        %s120 = smul.addr %s119, 8
        %s121 = scalar_lea.vmem [#allocation2], %s120
        %p122 = scmp.lt.s32.totalorder %s19, 0
        %s123 = scalar_select %p122, %s19, 0
        %s124 = smul.addr %s123, 8
        %s125 = scalar_lea.vmem %s0, %s124
        %v126 = vld [vmem:[%s125] sm:$0xff]
        %128 = vset.pattern.permute.xlu0 0
        %129 = vperm.xlu0 %128, %v126
        %v130 = vpop.permute.xlu0 %129
        %132 = vst [vmem:[%s121] sm:$0xff] %v130
        %s133 = sand.u32 %s63, 1
        %s134 = scalar_lea.sflag [#allocation3], %s133
        %s135 = sand.u32 %s63, 1
        %s136 = smul.addr %s135, 8
        %s137 = scalar_lea.vmem [#allocation2], %s136
        // Predicated region
        $region25: #{tpu_custom_call.1} parent=23 // pred_check
          %p138 = pneg %p73
        $region26: #{tpu_custom_call.1} parent=23 // pred_check_branch
          %140 = sbr.rel (%p138) target = $region28
        $region27: #{tpu_custom_call.1} parent=23 // pred_region
          %142 = vsyncadd %s134, 0
          %s143 = smul.addr %s19, 2
          %s144 = sadd.s32 %s20, %s143
          %s145 = smul.addr %s144, 8
          %s146 = scalar_lea.hbm %s1, %s145
          %s148 = sshll.u32 %s137, 4
          %s149 = int_to_ptr.vmem [resolvable:$true] %s148
          %s150 = sshll.u32 %s146, 4
          %s151 = int_to_ptr.hbm [resolvable:$true] %s150
          %153 = dma.vmem_to_hbm [thread:$0]  %s149, 128, %s151, %s134
        $region28: #{tpu_custom_call.1} parent=23 // pred_fallthru
          _
      $region24: #{tpu_custom_call.1} parent=5 // pred_fallthru
        _
      %p154 = scmp.le.s32.totalorder 2, %s10
      // Predicated region
      $region29: #{tpu_custom_call.1} parent=5 // pred_check
        %p155 = pneg %p154
      $region30: #{tpu_custom_call.1} parent=5 // pred_check_branch
        %157 = sbr.rel (%p155) target = $region32
      $region31: #{tpu_custom_call.1} parent=5 // pred_region
        %s158 = ssub.s32 %s10, 2
        // Predicated region
        $region33: #{tpu_custom_call.1} parent=31 // pred_check
          %p159 = pneg %p79
        $region34: #{tpu_custom_call.1} parent=31 // pred_check_branch
          %161 = sbr.rel (%p159) target = $region36
        $region35: #{tpu_custom_call.1} parent=31 // pred_region
          %s162 = sand.u32 %s64, 1
          %s163 = scalar_lea.sflag [#allocation3], %s162
          %s164 = sand.u32 %s64, 1
          %s165 = smul.addr %s164, 8
          %s166 = scalar_lea.vmem [#allocation2], %s165
          %168 = dma.done %s163, 128
        $region36: #{tpu_custom_call.1} parent=31 // pred_fallthru
          _
      $region32: #{tpu_custom_call.1} parent=5 // pred_fallthru
        _
    $region6: #{tpu_custom_call.1} parent=1 // loop_footer
      %s14 = sadd.s32 1, %s10
    $region7: #{tpu_custom_call.1} parent=1 // loop_footer_branch
      %9 = sbr.rel target = $region3
    $region8: #{tpu_custom_call.1} parent=1 // loop_exit
      _
    %169 = vsyncpa [#allocation3], 1
    %s170 = scalar_lea.sflag [#allocation3], 1
    %171 = vsyncpa %s170, 1

</llo_original>
